<compile_context>
chip_gen: v5e
topology: v5e:2x2
jax: 0.10.0
libtpu: 0.0.40
codegen_flags: <defaults>
</compile_context>

<pallas_src>
import jax
import jax.numpy as jnp
from jax import lax
from jax.experimental import pallas as pl
from jax.experimental.pallas import tpu as pltpu


_PAD_ERR = 1e30  # pad errors with -_PAD_ERR: they sort last, relu == 0, no effect


def _round_up(x, m):
    return (x + m - 1) // m * m


def _lovasz_tile_kernel(gts_ref, err_ref, gt_ref, tri_ref, low_ref, pos_ref,
                        out_ref, carry_ref):
    """One (TR, LANE) tile of the descending-sorted errors / permuted labels.

    gts_ref  : (1, 1) f32 SMEM    -- total number of positive labels (global)
    err_ref  : (TR, LANE) f32     -- sorted hinge errors, this tile
    gt_ref   : (TR, LANE) bf16    -- labels permuted by the same sort
    tri_ref  : (LANE, LANE) bf16  -- upper-triangular (incl. diag) cumsum matrix
    low_ref  : (TR, TR) bf16      -- strictly-lower-triangular row-prefix matrix
    pos_ref  : (TR, LANE) f32     -- local 1-based flat positions within a tile
    out_ref  : (1, 1) f32         -- resident loss accumulator
    carry_ref: (1, 1) f32 scratch -- running cum_gt carried across tiles
    """
    pid = pl.program_id(0)

    @pl.when(pid == 0)
    def _init():
        out_ref[...] = jnp.zeros_like(out_ref)
        carry_ref[...] = jnp.zeros_like(carry_ref)

    gt = gt_ref[...]
    err = err_ref[...]
    gts = gts_ref[0, 0]
    tr, lane = gt.shape

    # Inclusive within-row cumsum of gt via one MXU matmul. bf16 operands are
    # exact here (0/1 values, per-row sums <= lane <= 256); accumulation is f32.
    local_cum = jnp.dot(gt, tri_ref[...], preferred_element_type=jnp.float32)

    # Within-tile carry across rows: exclusive prefix of the per-row totals
    # (re-used from the cumsum's last column) as a small bf16 MXU matmul.
    row_tot = local_cum[:, lane - 1:lane]                              # (TR, 1)
    row_tot_b = jnp.broadcast_to(row_tot, (tr, 128)).astype(jnp.bfloat16)
    row_prefix = jnp.dot(low_ref[...], row_tot_b,
                         preferred_element_type=jnp.float32)[:, 0:1]   # (TR, 1)

    # Global inclusive cumsum of gt in flat sorted order (scalar cross-tile carry).
    cum = local_cum + (row_prefix + carry_ref[...])
    carry_ref[...] = carry_ref[...] + jnp.sum(row_tot, keepdims=True)

    # Lovasz gradient, elementwise:
    #   intersection[i] = gts - cum[i];  union[i] = gts + (pos[i] - cum[i])
    #   grad[i] = inter[i-1]/union[i-1] - inter[i]/union[i]
    # where the [i-1] terms use the exclusive cums; at global i == 0 the first
    # term is 1 (guard only triggers when gts == 0).  pos/cum stay exact in f32
    # for N < 2^24 flattened elements.
    gtf = gt.astype(jnp.float32)
    pos = pos_ref[...] + (pid * (tr * lane)).astype(jnp.float32)
    num = gts - cum                        # intersection (inclusive)
    den = num + pos                        # union        (inclusive), always >= 1
    num_prev = num + gtf                   # intersection (exclusive)
    den_prev = den + (gtf - 1.0)           # union        (exclusive)

    # Divides on the EUP: approx reciprocal + one Newton step (rel err ~1e-7).
    r = pl.reciprocal(den, approx=True)
    r = r * (2.0 - den * r)
    ok = den_prev > 0.0                    # false only at global i == 0 with gts == 0
    dps = jnp.where(ok, den_prev, 1.0)
    rp = pl.reciprocal(dps, approx=True)
    rp = rp * (2.0 - dps * rp)

    grad = jnp.where(ok, num_prev * rp, 1.0) - num * r
    # Padded entries have relu(err) == 0, so they contribute nothing.
    out_ref[...] += jnp.sum(jnp.maximum(err, 0.0) * grad, keepdims=True)


def binary_lovasz_loss(preds, labels, *, lane=256, tile_rows=256):
    """Lovasz hinge over fully flattened preds/labels (== the PyTorch module,
    which does preds.view(-1)).

    lane:       cumsum tile width; 256 matches the v6e/v7x 256x256 MXU
                (128 is fine on v5e).
    tile_rows:  sorted-order rows per grid step; 256 keeps the per-step VMEM
                footprint at a few MB (safe for v7x's 64 MiB VMEM with double
                buffering); v5e/v6e can raise it to ~1024.
    """
    preds_flat = preds.reshape(-1).astype(jnp.float32)
    labels_flat = labels.reshape(-1).astype(jnp.float32)
    n = preds_flat.shape[0]

    # Total positives: permutation-invariant -> computed outside the kernel.
    gts = jnp.sum(labels_flat).reshape(1, 1)

    # Hinge errors in plain XLA (elementwise; fuses with the sort-key negation).
    errors = 1.0 - preds_flat * (2.0 * labels_flat - 1.0)
    labels_b = labels_flat.astype(jnp.bfloat16)  # 0/1 exact; halves sort value bytes

    # Pad so the sorted view is (rows, lane) with rows % 8 == 0 and
    # rows % tile_rows == 0.  Padded errors sort last and contribute 0.
    rows = max(8, _round_up(pl.cdiv(n, lane), 8))
    if rows <= tile_rows:
        tr = rows
    else:
        tr = tile_rows
        rows = _round_up(rows, tr)
    pad = rows * lane - n
    if pad:
        errors = jnp.concatenate(
            [errors, jnp.full((pad,), -_PAD_ERR, jnp.float32)])
        labels_b = jnp.concatenate(
            [labels_b, jnp.zeros((pad,), jnp.bfloat16)])

    # TODO(synk): descending sort has no Pallas TPU primitive; one fused
    # key/value sort in XLA carries the bf16 labels (no argsort + gathers).
    neg_err_sorted, gt_sorted = lax.sort_key_val(-errors, labels_b)
    err2d = (-neg_err_sorted).reshape(rows, lane)
    gt2d = gt_sorted.reshape(rows, lane)

    # Constant matrices, hoisted out of the kernel (constant index_map ->
    # fetched once and kept resident, never rebuilt per grid step).
    li = jnp.arange(lane)
    tri = (li[:, None] <= li[None, :]).astype(jnp.bfloat16)          # (lane, lane)
    ri = jnp.arange(tr)
    strict_low = (ri[None, :] < ri[:, None]).astype(jnp.bfloat16)    # (tr, tr)
    local_pos = (jnp.arange(tr, dtype=jnp.int32)[:, None] * lane
                 + jnp.arange(lane, dtype=jnp.int32)[None, :] + 1
                 ).astype(jnp.float32)                                # (tr, lane)

    # TODO(synk): a two-pass scan (per-tile totals, then prefix-apply) would
    # expose a parallel grid axis for v7x's two TensorCores; not worthwhile
    # while the XLA sort above dominates wall-clock.
    loss = pl.pallas_call(
        _lovasz_tile_kernel,
        out_shape=jax.ShapeDtypeStruct((1, 1), jnp.float32),
        grid=(rows // tr,),
        in_specs=[
            pl.BlockSpec(memory_space=pltpu.MemorySpace.SMEM),        # gts scalar
            pl.BlockSpec((tr, lane), lambda i: (i, 0)),               # err tile
            pl.BlockSpec((tr, lane), lambda i: (i, 0)),               # gt tile
            pl.BlockSpec((lane, lane), lambda i: (0, 0)),             # tri (const)
            pl.BlockSpec((tr, tr), lambda i: (0, 0)),                 # strict_low
            pl.BlockSpec((tr, lane), lambda i: (0, 0)),               # local_pos
        ],
        out_specs=pl.BlockSpec((1, 1), lambda i: (0, 0)),             # resident acc
        scratch_shapes=[pltpu.VMEM((1, 1), jnp.float32)],             # cum_gt carry
        compiler_params=pltpu.CompilerParams(
            dimension_semantics=("arbitrary",)),
    )(gts, err2d, gt2d, tri, strict_low, local_pos)
    return loss[0, 0]


def _reference_loss(preds, labels):
    """Pure-JAX reference mirroring the PyTorch module (sanity check only)."""
    p = preds.reshape(-1).astype(jnp.float32)
    l = labels.reshape(-1).astype(jnp.float32)
    errors = 1.0 - p * (2.0 * l - 1.0)
    neg_sorted, gt_sorted = lax.sort_key_val(-errors, l)
    errors_sorted = -neg_sorted
    gts = jnp.sum(gt_sorted)
    intersection = gts - jnp.cumsum(gt_sorted)
    union = gts + jnp.cumsum(1.0 - gt_sorted)
    jaccard = 1.0 - intersection / union
    grad = jnp.concatenate([jaccard[:1], jaccard[1:] - jaccard[:-1]])
    return jnp.dot(jnp.maximum(errors_sorted, 0.0), grad)


if __name__ == "__main__":
    key = jax.random.PRNGKey(0)
    kp, kl = jax.random.split(key)
    # Binary segmentation logits/masks: batch=2, channels=1, 16x16 -> N = 512.
    preds = jax.random.normal(kp, (2, 1, 16, 16), dtype=jnp.float32)
    labels = (jax.random.uniform(kl, (2, 1, 16, 16)) > 0.5).astype(jnp.float32)

    out = binary_lovasz_loss(preds, labels)
    jax.block_until_ready(out)

    ref = _reference_loss(preds, labels)
    assert bool(jnp.isfinite(out)), out
    assert abs(float(out) - float(ref)) <= 1e-4 * max(1.0, abs(float(ref))), (
        float(out), float(ref))
    print("KERNEL_OK")
</pallas_src>

<mosaic_0001>
module attributes {stable_mosaic.version = 11 : i64} {
  func.func @_lovasz_tile_kernel(%arg0: i32, %arg1: memref<1x1xf32, #tpu.memory_space<smem>>, %arg2: memref<8x256xf32, #tpu.memory_space<vmem>>, %arg3: memref<8x256xbf16, #tpu.memory_space<vmem>>, %arg4: memref<256x256xbf16, #tpu.memory_space<vmem>>, %arg5: memref<8x8xbf16, #tpu.memory_space<vmem>>, %arg6: memref<8x256xf32, #tpu.memory_space<vmem>>, %arg7: memref<1x1xf32, #tpu.memory_space<vmem>>, %arg8: memref<1x1xf32, #tpu.memory_space<vmem>>) attributes {dimension_semantics = [#tpu.dimension_semantics<arbitrary>], iteration_bounds = array<i64: 1>, scalar_prefetch = 0 : i64, scratch_operands = 1 : i64, tpu.core_type = #tpu.core_type<tc>, window_params = [{transform_indices = @transform_0, window_bounds = array<i64: 1, 1>}, {transform_indices = @transform_1, window_bounds = array<i64: 8, 256>}, {transform_indices = @transform_2, window_bounds = array<i64: 8, 256>}, {pipeline_mode = #tpu.pipeline_mode<synchronous>, transform_indices = @transform_3, window_bounds = array<i64: 256, 256>}, {pipeline_mode = #tpu.pipeline_mode<synchronous>, transform_indices = @transform_4, window_bounds = array<i64: 8, 8>}, {pipeline_mode = #tpu.pipeline_mode<synchronous>, transform_indices = @transform_5, window_bounds = array<i64: 8, 256>}, {pipeline_mode = #tpu.pipeline_mode<synchronous>, transform_indices = @transform_6, window_bounds = array<i64: 1, 1>}]} {
    %c0_i32 = arith.constant 0 : i32
    %0 = arith.cmpi eq, %arg0, %c0_i32 : i32
    %1 = arith.extui %0 : i1 to i32
    %c0_i32_0 = arith.constant 0 : i32
    %2 = arith.cmpi ne, %1, %c0_i32_0 : i32
    scf.if %2 {
      %cst_32 = arith.constant 0.000000e+00 : f32
      %71 = vector.broadcast %cst_32 : f32 to vector<1x1xf32>
      %c0_33 = arith.constant 0 : index
      %c0_34 = arith.constant 0 : index
      %72 = vector.load %arg7[%c0_33, %c0_34] : memref<1x1xf32, #tpu.memory_space<vmem>>, vector<1x1xf32>
      tpu.vector_store %arg7[%c0_33, %c0_34], %71 {strides = array<i32>} : memref<1x1xf32, #tpu.memory_space<vmem>>, vector<1x1xf32>,
      %cst_35 = arith.constant 0.000000e+00 : f32
      %73 = vector.broadcast %cst_35 : f32 to vector<1x1xf32>
      %c0_36 = arith.constant 0 : index
      %c0_37 = arith.constant 0 : index
      %74 = vector.load %arg8[%c0_36, %c0_37] : memref<1x1xf32, #tpu.memory_space<vmem>>, vector<1x1xf32>
      tpu.vector_store %arg8[%c0_36, %c0_37], %73 {strides = array<i32>} : memref<1x1xf32, #tpu.memory_space<vmem>>, vector<1x1xf32>,
    } else {
    }
    %c0 = arith.constant 0 : index
    %c0_1 = arith.constant 0 : index
    %3 = vector.load %arg3[%c0, %c0_1] : memref<8x256xbf16, #tpu.memory_space<vmem>>, vector<8x256xbf16>
    %c0_2 = arith.constant 0 : index
    %c0_3 = arith.constant 0 : index
    %4 = vector.load %arg2[%c0_2, %c0_3] : memref<8x256xf32, #tpu.memory_space<vmem>>, vector<8x256xf32>
    %c0_4 = arith.constant 0 : index
    %c0_5 = arith.constant 0 : index
    %5 = memref.load %arg1[%c0_4, %c0_5] : memref<1x1xf32, #tpu.memory_space<smem>>
    %c0_6 = arith.constant 0 : index
    %c0_7 = arith.constant 0 : index
    %6 = vector.load %arg4[%c0_6, %c0_7] : memref<256x256xbf16, #tpu.memory_space<vmem>>, vector<256x256xbf16>
    %cst = arith.constant dense<0.000000e+00> : vector<8x256xf32>
    %7 = tpu.matmul %3, %6, %cst {dimension_numbers = #tpu.dot_dimension_numbers<[1], [0], [0], [1], [0, 0, 1, 1], [], []>} : vector<8x256xbf16>, vector<256x256xbf16>, vector<8x256xf32> -> vector<8x256xf32>
    %8 = vector.extract_strided_slice %7 {offsets = [0, 255], sizes = [8, 1], strides = [1, 1]} : vector<8x256xf32> to vector<8x1xf32>
    %9 = vector.shape_cast %8 : vector<8x1xf32> to vector<8x1xf32>
    %10 = vector.broadcast %9 : vector<8x1xf32> to vector<8x128xf32>
    %11 = arith.truncf %10 : vector<8x128xf32> to vector<8x128xbf16>
    %c0_8 = arith.constant 0 : index
    %c0_9 = arith.constant 0 : index
    %12 = vector.load %arg5[%c0_8, %c0_9] : memref<8x8xbf16, #tpu.memory_space<vmem>>, vector<8x8xbf16>
    %cst_10 = arith.constant dense<0.000000e+00> : vector<8x128xf32>
    %13 = tpu.matmul %12, %11, %cst_10 {dimension_numbers = #tpu.dot_dimension_numbers<[1], [0], [0], [1], [0, 0, 1, 1], [], []>} : vector<8x8xbf16>, vector<8x128xbf16>, vector<8x128xf32> -> vector<8x128xf32>
    %14 = vector.extract_strided_slice %13 {offsets = [0, 0], sizes = [8, 1], strides = [1, 1]} : vector<8x128xf32> to vector<8x1xf32>
    %c0_11 = arith.constant 0 : index
    %c0_12 = arith.constant 0 : index
    %15 = vector.load %arg8[%c0_11, %c0_12] : memref<1x1xf32, #tpu.memory_space<vmem>>, vector<1x1xf32>
    %16 = vector.broadcast %15 : vector<1x1xf32> to vector<8x1xf32>
    %17 = arith.addf %14, %16 : vector<8x1xf32>
    %18 = vector.broadcast %17 : vector<8x1xf32> to vector<8x256xf32>
    %19 = arith.addf %7, %18 : vector<8x256xf32>
    %c0_13 = arith.constant 0 : index
    %c0_14 = arith.constant 0 : index
    %20 = vector.load %arg8[%c0_13, %c0_14] : memref<1x1xf32, #tpu.memory_space<vmem>>, vector<1x1xf32>
    %21 = vector.shape_cast %8 : vector<8x1xf32> to vector<1x8x1xf32>
    %cst_15 = arith.constant dense<0.000000e+00> : vector<1xf32>
    %22 = vector.multi_reduction <add>, %21, %cst_15 [1, 2] : vector<1x8x1xf32> to vector<1xf32>
    %23 = vector.shape_cast %22 : vector<1xf32> to vector<1x1x1xf32>
    %24 = vector.extract %23[0, 0, 0] : f32 from vector<1x1x1xf32>
    %25 = vector.broadcast %24 : f32 to vector<1x1xf32>
    %26 = arith.addf %20, %25 : vector<1x1xf32>
    %c0_16 = arith.constant 0 : index
    %c0_17 = arith.constant 0 : index
    %27 = vector.load %arg8[%c0_16, %c0_17] : memref<1x1xf32, #tpu.memory_space<vmem>>, vector<1x1xf32>
    tpu.vector_store %arg8[%c0_16, %c0_17], %26 {strides = array<i32>} : memref<1x1xf32, #tpu.memory_space<vmem>>, vector<1x1xf32>,
    %28 = arith.extf %3 : vector<8x256xbf16> to vector<8x256xf32>
    %c0_18 = arith.constant 0 : index
    %c0_19 = arith.constant 0 : index
    %29 = vector.load %arg6[%c0_18, %c0_19] : memref<8x256xf32, #tpu.memory_space<vmem>>, vector<8x256xf32>
    %c2048_i32 = arith.constant 2048 : i32
    %30 = arith.muli %arg0, %c2048_i32 : i32
    %31 = arith.sitofp %30 : i32 to f32
    %32 = vector.broadcast %31 : f32 to vector<8x256xf32>
    %33 = arith.addf %29, %32 : vector<8x256xf32>
    %34 = vector.broadcast %5 : f32 to vector<8x256xf32>
    %35 = arith.subf %34, %19 : vector<8x256xf32>
    %36 = arith.addf %35, %33 : vector<8x256xf32>
    %37 = arith.addf %35, %28 : vector<8x256xf32>
    %cst_20 = arith.constant 1.000000e+00 : f32
    %38 = vector.broadcast %cst_20 : f32 to vector<8x256xf32>
    %39 = arith.subf %28, %38 : vector<8x256xf32>
    %40 = arith.addf %36, %39 : vector<8x256xf32>
    %41 = tpu.reciprocal %36 {approx = true} : vector<8x256xf32> -> vector<8x256xf32>
    %42 = arith.mulf %36, %41 : vector<8x256xf32>
    %cst_21 = arith.constant 2.000000e+00 : f32
    %43 = vector.broadcast %cst_21 : f32 to vector<8x256xf32>
    %44 = arith.subf %43, %42 : vector<8x256xf32>
    %45 = arith.mulf %41, %44 : vector<8x256xf32>
    %cst_22 = arith.constant 0.000000e+00 : f32
    %46 = vector.broadcast %cst_22 : f32 to vector<8x256xf32>
    %47 = arith.cmpf ogt, %40, %46 : vector<8x256xf32>
    %cst_23 = arith.constant 1.000000e+00 : f32
    %48 = vector.broadcast %cst_23 : f32 to vector<8x256xf32>
    %49 = arith.select %47, %40, %48 : vector<8x256xi1>, vector<8x256xf32>
    %50 = tpu.reciprocal %49 {approx = true} : vector<8x256xf32> -> vector<8x256xf32>
    %51 = arith.mulf %49, %50 : vector<8x256xf32>
    %cst_24 = arith.constant 2.000000e+00 : f32
    %52 = vector.broadcast %cst_24 : f32 to vector<8x256xf32>
    %53 = arith.subf %52, %51 : vector<8x256xf32>
    %54 = arith.mulf %50, %53 : vector<8x256xf32>
    %55 = arith.mulf %37, %54 : vector<8x256xf32>
    %cst_25 = arith.constant 1.000000e+00 : f32
    %56 = vector.broadcast %cst_25 : f32 to vector<8x256xf32>
    %57 = arith.select %47, %55, %56 : vector<8x256xi1>, vector<8x256xf32>
    %58 = arith.mulf %35, %45 : vector<8x256xf32>
    %59 = arith.subf %57, %58 : vector<8x256xf32>
    %c0_26 = arith.constant 0 : index
    %c0_27 = arith.constant 0 : index
    %60 = vector.load %arg7[%c0_26, %c0_27] : memref<1x1xf32, #tpu.memory_space<vmem>>, vector<1x1xf32>
    %cst_28 = arith.constant 0.000000e+00 : f32
    %61 = vector.broadcast %cst_28 : f32 to vector<8x256xf32>
    %62 = arith.maximumf %4, %61 : vector<8x256xf32>
    %63 = arith.mulf %62, %59 : vector<8x256xf32>
    %64 = vector.shape_cast %63 : vector<8x256xf32> to vector<1x8x256xf32>
    %cst_29 = arith.constant dense<0.000000e+00> : vector<1xf32>
    %65 = vector.multi_reduction <add>, %64, %cst_29 [1, 2] : vector<1x8x256xf32> to vector<1xf32>
    %66 = vector.shape_cast %65 : vector<1xf32> to vector<1x1x1xf32>
    %67 = vector.extract %66[0, 0, 0] : f32 from vector<1x1x1xf32>
    %68 = vector.broadcast %67 : f32 to vector<1x1xf32>
    %69 = arith.addf %60, %68 : vector<1x1xf32>
    %c0_30 = arith.constant 0 : index
    %c0_31 = arith.constant 0 : index
    %70 = vector.load %arg7[%c0_30, %c0_31] : memref<1x1xf32, #tpu.memory_space<vmem>>, vector<1x1xf32>
    tpu.vector_store %arg7[%c0_30, %c0_31], %69 {strides = array<i32>} : memref<1x1xf32, #tpu.memory_space<vmem>>, vector<1x1xf32>,
    return
  }
  func.func @transform_0(%arg0: i32) -> (i32, i32) {
    %c0_i32 = arith.constant 0 : i32
    %c0_i32_0 = arith.constant 0 : i32
    %c0_i32_1 = arith.constant 0 : i32
    return %c0_i32, %c0_i32_0 : i32, i32
  }
  func.func @transform_1(%arg0: i32) -> (i32, i32) {
    %c0_i32 = arith.constant 0 : i32
    %c0_i32_0 = arith.constant 0 : i32
    return %arg0, %c0_i32 : i32, i32
  }
  func.func @transform_2(%arg0: i32) -> (i32, i32) {
    %c0_i32 = arith.constant 0 : i32
    %c0_i32_0 = arith.constant 0 : i32
    return %arg0, %c0_i32 : i32, i32
  }
  func.func @transform_3(%arg0: i32) -> (i32, i32) {
    %c0_i32 = arith.constant 0 : i32
    %c0_i32_0 = arith.constant 0 : i32
    %c0_i32_1 = arith.constant 0 : i32
    return %c0_i32, %c0_i32_0 : i32, i32
  }
  func.func @transform_4(%arg0: i32) -> (i32, i32) {
    %c0_i32 = arith.constant 0 : i32
    %c0_i32_0 = arith.constant 0 : i32
    %c0_i32_1 = arith.constant 0 : i32
    return %c0_i32, %c0_i32_0 : i32, i32
  }
  func.func @transform_5(%arg0: i32) -> (i32, i32) {
    %c0_i32 = arith.constant 0 : i32
    %c0_i32_0 = arith.constant 0 : i32
    %c0_i32_1 = arith.constant 0 : i32
    return %c0_i32, %c0_i32_0 : i32, i32
  }
  func.func @transform_6(%arg0: i32) -> (i32, i32) {
    %c0_i32 = arith.constant 0 : i32
    %c0_i32_0 = arith.constant 0 : i32
    %c0_i32_1 = arith.constant 0 : i32
    return %c0_i32, %c0_i32_0 : i32, i32
  }
}

</mosaic_0001>

<llo_original>
// kernel: tpu_custom_call.1
$region0: #{tpu_custom_call.1}
  #allocation0 [shape = 'u32[]', space=smem, size = 0x4, offset = 0x4, fixed_abs, tag = 'smem constant byte address 0x4 - core index']
  #allocation1 [shape = 'u32[72,128]{1,0:T(1,128)}', space=vmem, size = 0x9000, scoped, tag = 'internal scratch']
  #allocation2 [shape = 'f32[1,1]{1,0:T(1,128)}', space=vmem, size = 0x200, scoped, tag = 'scratch operand']
  #allocation3 [shape = 'f32[1,1]{1,0:T(1,128)S(6)}', space=smem, size = 0x200, scoped, tag = 'scoped memory for tpu_custom_call.1']
  %s0 = inlined_call_operand.<no memory space> [shape: f32[1,1], index: 0, kind: input, shape index: {}]
  %s1 = inlined_call_operand.hbm [shape: f32[8,256], index: 1, kind: input, shape index: {}]
  %s2 = inlined_call_operand.hbm [shape: bf16[8,256], index: 2, kind: input, shape index: {}]
  %s3 = inlined_call_operand.hbm [shape: bf16[256,256], index: 3, kind: input, shape index: {}]
  %s4 = inlined_call_operand.vmem [shape: bf16[8,8], index: 4, kind: input, shape index: {}]
  %s5 = inlined_call_operand.hbm [shape: f32[8,256], index: 5, kind: input, shape index: {}]
  %s6 = inlined_call_operand.hbm [shape: f32[1,1], index: 6, kind: output, shape index: {}]
  %s7 = sld [smem:[#allocation0]]
  $region54: #{tpu_custom_call.1} parent=0
    _
  %s9 = ssub.s32 1, %s7
  %s10 = scalar_select 0, %s9, %s7
  %11 = sst [smem:[#allocation3]] %s0
  $region1: #{tpu_custom_call.1} parent=0
    #allocation4 [shape = 'u8[8192]{0}', space=vmem, size = 0x2000, scoped, tag = 'input window, operand 1, single buffered']
    #allocation5 [shape = 's32[1]{0}', space=sflag, size = 0x4, scoped, tag = 'scoped memory for tpu_custom_call.1']
    #allocation6 [shape = 's32[1]{0}', space=sflag, size = 0x4, scoped, tag = 'scoped memory for tpu_custom_call.1']
    #allocation7 [shape = 'u8[4096]{0}', space=vmem, size = 0x1000, scoped, tag = 'input window, operand 2, single buffered']
    #allocation8 [shape = 's32[1]{0}', space=sflag, size = 0x4, scoped, tag = 'scoped memory for tpu_custom_call.1']
    #allocation9 [shape = 'u8[131072]{0}', space=vmem, size = 0x20000, scoped, tag = 'input window, operand 3, single buffered']
    #allocation10 [shape = 'u8[8192]{0}', space=vmem, size = 0x2000, scoped, tag = 'input window, operand 5, single buffered']
    #allocation11 [shape = 's32[1]{0}', space=sflag, size = 0x4, scoped, tag = 'scoped memory for tpu_custom_call.1']
    #allocation12 [shape = 'u8[512]{0}', space=vmem, size = 0x400, scoped, tag = 'output window, operand 0, single buffered']
    %12 = vsyncpa [#allocation5], 0
    %13 = vsyncpa [#allocation8], 0
    %14 = vsyncpa [#allocation11], 0
    %15 = vsyncpa [#allocation6], 0
    // Predicated region
    $region2: #{tpu_custom_call.1} parent=1 // pred_check
      _
    $region3: #{tpu_custom_call.1} parent=1 // pred_check_branch
      %17 = sbr.rel (0) target = $region5
    $region4: #{tpu_custom_call.1} parent=1 // pred_region
      _
    $region5: #{tpu_custom_call.1} parent=1 // pred_fallthru
      _
    // Predicated region
    $region6: #{tpu_custom_call.1} parent=1 // pred_check
      _
    $region7: #{tpu_custom_call.1} parent=1 // pred_check_branch
      %19 = sbr.rel (0) target = $region9
    $region8: #{tpu_custom_call.1} parent=1 // pred_region
      %21 = vsyncadd [#allocation5], 0
      %s23 = sshll.u32 %s1, 4
      %s24 = int_to_ptr.hbm [resolvable:$true] %s23
      %s25 = sshll.u32 [#allocation4], 4
      %s26 = int_to_ptr.vmem [resolvable:$true] %s25
      %28 = dma.hbm_to_vmem [thread:$0]  %s24, 256, %s26, [#allocation5]
    $region9: #{tpu_custom_call.1} parent=1 // pred_fallthru
      _
    // Predicated region
    $region10: #{tpu_custom_call.1} parent=1 // pred_check
      _
    $region11: #{tpu_custom_call.1} parent=1 // pred_check_branch
      %30 = sbr.rel (0) target = $region13
    $region12: #{tpu_custom_call.1} parent=1 // pred_region
      %32 = vsyncadd [#allocation8], 0
      %s34 = sshll.u32 %s2, 4
      %s35 = int_to_ptr.hbm [resolvable:$true] %s34
      %s36 = sshll.u32 [#allocation7], 4
      %s37 = int_to_ptr.vmem [resolvable:$true] %s36
      %39 = dma.hbm_to_vmem [thread:$0]  %s35, 128, %s37, [#allocation8]
    $region13: #{tpu_custom_call.1} parent=1 // pred_fallthru
      _
    // Predicated region
    $region14: #{tpu_custom_call.1} parent=1 // pred_check
      _
    $region15: #{tpu_custom_call.1} parent=1 // pred_check_branch
      %41 = sbr.rel (0) target = $region17
    $region16: #{tpu_custom_call.1} parent=1 // pred_region
      %43 = vsyncadd [#allocation8], 0
      %s44 = sshll.u32 %s3, 4
      %s45 = int_to_ptr.hbm [resolvable:$true] %s44
      %s46 = sshll.u32 [#allocation9], 4
      %s47 = int_to_ptr.vmem [resolvable:$true] %s46
      %52 = dma.hbm_to_vmem [thread:$0]  %s45, 4096, %s47, [#allocation8], 128, 128, 8
    $region17: #{tpu_custom_call.1} parent=1 // pred_fallthru
      _
    // Predicated region
    $region18: #{tpu_custom_call.1} parent=1 // pred_check
      _
    $region19: #{tpu_custom_call.1} parent=1 // pred_check_branch
      %54 = sbr.rel (0) target = $region21
    $region20: #{tpu_custom_call.1} parent=1 // pred_region
      _
    $region21: #{tpu_custom_call.1} parent=1 // pred_fallthru
      _
    // Predicated region
    $region22: #{tpu_custom_call.1} parent=1 // pred_check
      _
    $region23: #{tpu_custom_call.1} parent=1 // pred_check_branch
      %56 = sbr.rel (0) target = $region25
    $region24: #{tpu_custom_call.1} parent=1 // pred_region
      %58 = vsyncadd [#allocation11], 0
      %s60 = sshll.u32 %s5, 4
      %s61 = int_to_ptr.hbm [resolvable:$true] %s60
      %s62 = sshll.u32 [#allocation10], 4
      %s63 = int_to_ptr.vmem [resolvable:$true] %s62
      %65 = dma.hbm_to_vmem [thread:$0]  %s61, 256, %s63, [#allocation11]
    $region25: #{tpu_custom_call.1} parent=1 // pred_fallthru
      _
    // Predicated region
    $region26: #{tpu_custom_call.1} parent=1 // pred_check
      _
    $region27: #{tpu_custom_call.1} parent=1 // pred_check_branch
      %67 = sbr.rel (0) target = $region29
    $region28: #{tpu_custom_call.1} parent=1 // pred_region
      %69 = dma.done [#allocation5], 256
    $region29: #{tpu_custom_call.1} parent=1 // pred_fallthru
      _
    // Predicated region
    $region30: #{tpu_custom_call.1} parent=1 // pred_check
      _
    $region31: #{tpu_custom_call.1} parent=1 // pred_check_branch
      %71 = sbr.rel (0) target = $region33
    $region32: #{tpu_custom_call.1} parent=1 // pred_region
      %73 = dma.done [#allocation8], 128
    $region33: #{tpu_custom_call.1} parent=1 // pred_fallthru
      _
    // Predicated region
    $region34: #{tpu_custom_call.1} parent=1 // pred_check
      _
    $region35: #{tpu_custom_call.1} parent=1 // pred_check_branch
      %75 = sbr.rel (0) target = $region37
    $region36: #{tpu_custom_call.1} parent=1 // pred_region
      %77 = dma.done [#allocation8], 4096
    $region37: #{tpu_custom_call.1} parent=1 // pred_fallthru
      _
    // Predicated region
    $region38: #{tpu_custom_call.1} parent=1 // pred_check
      _
    $region39: #{tpu_custom_call.1} parent=1 // pred_check_branch
      %79 = sbr.rel (0) target = $region41
    $region40: #{tpu_custom_call.1} parent=1 // pred_region
      %81 = dma.done [#allocation11], 256
    $region41: #{tpu_custom_call.1} parent=1 // pred_fallthru
      _
    %p83 = scmp.eq.s32.totalorder 0, 0
    // Predicated region
    $region42: #{tpu_custom_call.1} parent=1 // pred_check
      %p84 = pneg %p83
    $region43: #{tpu_custom_call.1} parent=1 // pred_check_branch
      %86 = sbr.rel (%p84) target = $region45
    $region44: #{tpu_custom_call.1} parent=1 // pred_region
      %vm87 = vcmask 0
      %88 = vst.msk [vmem:[#allocation12] sm:$0x1] %vm87, 0.0
      %89 = vst.msk [vmem:[#allocation2] sm:$0x1] %vm87, 0.0
    $region45: #{tpu_custom_call.1} parent=1 // pred_fallthru
      _
    %v90 = vld [vmem:[#allocation7] sm:$0xff]
    %v91 = vld [vmem:[#allocation4] sm:$0xff]
    %v92 = vld [vmem:[#allocation4 + $0x8] sm:$0xff]
    %s93 = sld [smem:[#allocation3]]
    %v94 = vld [vmem:[#allocation9] sm:$0xff]
    %v95 = vld [vmem:[#allocation9 + $0x8] sm:$0xff]
    %v96 = vld [vmem:[#allocation9 + $0x10] sm:$0xff]
    %v97 = vld [vmem:[#allocation9 + $0x18] sm:$0xff]
    %v98 = vld [vmem:[#allocation9 + $0x20] sm:$0xff]
    %v99 = vld [vmem:[#allocation9 + $0x28] sm:$0xff]
    %v100 = vld [vmem:[#allocation9 + $0x30] sm:$0xff]
    %v101 = vld [vmem:[#allocation9 + $0x38] sm:$0xff]
    %v102 = vld [vmem:[#allocation9 + $0x40] sm:$0xff]
    %v103 = vld [vmem:[#allocation9 + $0x48] sm:$0xff]
    %v104 = vld [vmem:[#allocation9 + $0x50] sm:$0xff]
    %v105 = vld [vmem:[#allocation9 + $0x58] sm:$0xff]
    %v106 = vld [vmem:[#allocation9 + $0x60] sm:$0xff]
    %v107 = vld [vmem:[#allocation9 + $0x68] sm:$0xff]
    %v108 = vld [vmem:[#allocation9 + $0x70] sm:$0xff]
    %v109 = vld [vmem:[#allocation9 + $0x78] sm:$0xff]
    %v110 = vld [vmem:[#allocation9 + $0x80] sm:$0xff]
    %v111 = vld [vmem:[#allocation9 + $0x88] sm:$0xff]
    %v112 = vld [vmem:[#allocation9 + $0x90] sm:$0xff]
    %v113 = vld [vmem:[#allocation9 + $0x98] sm:$0xff]
    %v114 = vld [vmem:[#allocation9 + $0xa0] sm:$0xff]
    %v115 = vld [vmem:[#allocation9 + $0xa8] sm:$0xff]
    %v116 = vld [vmem:[#allocation9 + $0xb0] sm:$0xff]
    %v117 = vld [vmem:[#allocation9 + $0xb8] sm:$0xff]
    %v118 = vld [vmem:[#allocation9 + $0xc0] sm:$0xff]
    %v119 = vld [vmem:[#allocation9 + $0xc8] sm:$0xff]
    %v120 = vld [vmem:[#allocation9 + $0xd0] sm:$0xff]
    %v121 = vld [vmem:[#allocation9 + $0xd8] sm:$0xff]
    %v122 = vld [vmem:[#allocation9 + $0xe0] sm:$0xff]
    %v123 = vld [vmem:[#allocation9 + $0xe8] sm:$0xff]
    %v124 = vld [vmem:[#allocation9 + $0xf0] sm:$0xff]
    %v125 = vld [vmem:[#allocation9 + $0xf8] sm:$0xff]
    %v127 = vunpack.c.l.b16 %v90
    %v128 = vunpack.c.h.b16 %v90
    %v129 = vpack.c.b16 %v127, %v127
    %v130 = vpack.c.b16 %v128, %v128
    %v165 = vunpack.c.l.b16 %v94
    %v166 = vunpack.c.h.b16 %v94
    %v167 = vunpack.c.l.b16 %v95
    %v168 = vunpack.c.h.b16 %v95
    %v169 = vunpack.c.l.b16 %v96
    %v170 = vunpack.c.h.b16 %v96
    %v171 = vunpack.c.l.b16 %v97
    %v172 = vunpack.c.h.b16 %v97
    %v173 = vunpack.c.l.b16 %v98
    %v174 = vunpack.c.h.b16 %v98
    %v175 = vunpack.c.l.b16 %v99
    %v176 = vunpack.c.h.b16 %v99
    %v177 = vunpack.c.l.b16 %v100
    %v178 = vunpack.c.h.b16 %v100
    %v179 = vunpack.c.l.b16 %v101
    %v180 = vunpack.c.h.b16 %v101
    %v181 = vunpack.c.l.b16 %v102
    %v182 = vunpack.c.h.b16 %v102
    %v183 = vunpack.c.l.b16 %v103
    %v184 = vunpack.c.h.b16 %v103
    %v185 = vunpack.c.l.b16 %v104
    %v186 = vunpack.c.h.b16 %v104
    %v187 = vunpack.c.l.b16 %v105
    %v188 = vunpack.c.h.b16 %v105
    %v189 = vunpack.c.l.b16 %v106
    %v190 = vunpack.c.h.b16 %v106
    %v191 = vunpack.c.l.b16 %v107
    %v192 = vunpack.c.h.b16 %v107
    %v193 = vunpack.c.l.b16 %v108
    %v194 = vunpack.c.h.b16 %v108
    %v195 = vunpack.c.l.b16 %v109
    %v196 = vunpack.c.h.b16 %v109
    %v197 = vunpack.c.l.b16 %v110
    %v198 = vunpack.c.h.b16 %v110
    %v199 = vunpack.c.l.b16 %v111
    %v200 = vunpack.c.h.b16 %v111
    %v201 = vunpack.c.l.b16 %v112
    %v202 = vunpack.c.h.b16 %v112
    %v203 = vunpack.c.l.b16 %v113
    %v204 = vunpack.c.h.b16 %v113
    %v205 = vunpack.c.l.b16 %v114
    %v206 = vunpack.c.h.b16 %v114
    %v207 = vunpack.c.l.b16 %v115
    %v208 = vunpack.c.h.b16 %v115
    %v209 = vunpack.c.l.b16 %v116
    %v210 = vunpack.c.h.b16 %v116
    %v211 = vunpack.c.l.b16 %v117
    %v212 = vunpack.c.h.b16 %v117
    %v213 = vunpack.c.l.b16 %v118
    %v214 = vunpack.c.h.b16 %v118
    %v215 = vunpack.c.l.b16 %v119
    %v216 = vunpack.c.h.b16 %v119
    %v217 = vunpack.c.l.b16 %v120
    %v218 = vunpack.c.h.b16 %v120
    %v219 = vunpack.c.l.b16 %v121
    %v220 = vunpack.c.h.b16 %v121
    %v221 = vunpack.c.l.b16 %v122
    %v222 = vunpack.c.h.b16 %v122
    %v223 = vunpack.c.l.b16 %v123
    %v224 = vunpack.c.h.b16 %v123
    %v225 = vunpack.c.l.b16 %v124
    %v226 = vunpack.c.h.b16 %v124
    %v227 = vunpack.c.l.b16 %v125
    %v228 = vunpack.c.h.b16 %v125
    %v229 = vpack.c.b16 %v167, %v165
    %v230 = vpack.c.b16 %v168, %v166
    %v231 = vpack.c.b16 %v171, %v169
    %v232 = vpack.c.b16 %v172, %v170
    %v233 = vpack.c.b16 %v175, %v173
    %v234 = vpack.c.b16 %v176, %v174
    %v235 = vpack.c.b16 %v179, %v177
    %v236 = vpack.c.b16 %v180, %v178
    %v237 = vpack.c.b16 %v183, %v181
    %v238 = vpack.c.b16 %v184, %v182
    %v239 = vpack.c.b16 %v187, %v185
    %v240 = vpack.c.b16 %v188, %v186
    %v241 = vpack.c.b16 %v191, %v189
    %v242 = vpack.c.b16 %v192, %v190
    %v243 = vpack.c.b16 %v195, %v193
    %v244 = vpack.c.b16 %v196, %v194
    %v245 = vpack.c.b16 %v199, %v197
    %v246 = vpack.c.b16 %v200, %v198
    %v247 = vpack.c.b16 %v203, %v201
    %v248 = vpack.c.b16 %v204, %v202
    %v249 = vpack.c.b16 %v207, %v205
    %v250 = vpack.c.b16 %v208, %v206
    %v251 = vpack.c.b16 %v211, %v209
    %v252 = vpack.c.b16 %v212, %v210
    %v253 = vpack.c.b16 %v215, %v213
    %v254 = vpack.c.b16 %v216, %v214
    %v255 = vpack.c.b16 %v219, %v217
    %v256 = vpack.c.b16 %v220, %v218
    %v257 = vpack.c.b16 %v223, %v221
    %v258 = vpack.c.b16 %v224, %v222
    %v259 = vpack.c.b16 %v227, %v225
    %v260 = vpack.c.b16 %v228, %v226
    %293 = vmatpush.bf16.msra.mxu0 %v243
    %294 = vmatpush.bf16.msra.mxu0 %v241
    %295 = vmatpush.bf16.msra.mxu0 %v239
    %296 = vmatpush.bf16.msra.mxu0 %v237
    %297 = vmatpush.bf16.msra.mxu0 %v235
    %298 = vmatpush.bf16.msra.mxu0 %v233
    %299 = vmatpush.bf16.msra.mxu0 %v231
    %300 = vmatpush.bf16.msra.mxu0 %v229
    %301 = vmatmul.bf16.gmra.mxu0 %v129
    %v302 = vpop.f32.mrf.mxu0
    %v303 = vadd.f32 0.0, %v302
    %v304 = vpop.f32.mrf.mxu0
    %305 = vdwg.mxu0
    %306 = vmatpush.bf16.msra.mxu0 %v259
    %307 = vmatpush.bf16.msra.mxu0 %v257
    %308 = vmatpush.bf16.msra.mxu0 %v255
    %309 = vmatpush.bf16.msra.mxu0 %v253
    %310 = vmatpush.bf16.msra.mxu0 %v251
    %311 = vmatpush.bf16.msra.mxu0 %v249
    %312 = vmatpush.bf16.msra.mxu0 %v247
    %313 = vmatpush.bf16.msra.mxu0 %v245
    %314 = vmatmul.bf16.gmra.mxu0 %v130
    %v315 = vpop.f32.mrf.mxu0
    %v316 = vadd.f32 %v303, %v315
    %v317 = vpop.f32.mrf.mxu0
    %318 = vdwg.mxu0
    %319 = vmatpush.bf16.msra.mxu0 %v244
    %320 = vmatpush.bf16.msra.mxu0 %v242
    %321 = vmatpush.bf16.msra.mxu0 %v240
    %322 = vmatpush.bf16.msra.mxu0 %v238
    %323 = vmatpush.bf16.msra.mxu0 %v236
    %324 = vmatpush.bf16.msra.mxu0 %v234
    %325 = vmatpush.bf16.msra.mxu0 %v232
    %326 = vmatpush.bf16.msra.mxu0 %v230
    %327 = vmatmul.bf16.gmra.mxu0 %v129
    %v328 = vpop.f32.mrf.mxu0
    %v329 = vadd.f32 0.0, %v328
    %v330 = vpop.f32.mrf.mxu0
    %331 = vdwg.mxu0
    %332 = vmatpush.bf16.msra.mxu0 %v260
    %333 = vmatpush.bf16.msra.mxu0 %v258
    %334 = vmatpush.bf16.msra.mxu0 %v256
    %335 = vmatpush.bf16.msra.mxu0 %v254
    %336 = vmatpush.bf16.msra.mxu0 %v252
    %337 = vmatpush.bf16.msra.mxu0 %v250
    %338 = vmatpush.bf16.msra.mxu0 %v248
    %339 = vmatpush.bf16.msra.mxu0 %v246
    %340 = vmatmul.bf16.gmra.mxu0 %v130
    %v341 = vpop.f32.mrf.mxu0
    %v342 = vadd.f32 %v329, %v341
    %v343 = vpop.f32.mrf.mxu0
    %344 = vdwg.mxu0
    %346 = vset.pattern.permute.xlu0 127
    %347 = vperm.xlu0 %346, %v342
    %v348 = vpop.permute.xlu0 %347
    %v350 = vpack.c.bf16 %v348, %v348
    %v351 = vld [vmem:[%s4] sm:$0xf]
    %vm352 = vcmask 64512
    %v354 = vsel %vm352, %v351, 0
    %vm356 = vcmask 1043456
    %v358 = vsel %vm356, %v350, 0
    %360 = vmatpush.bf16.msra.mxu0 0
    %361 = vmatpush.bf16.msra.mxu0 0
    %362 = vmatpush.bf16.msra.mxu0 0
    %363 = vmatpush.bf16.msra.mxu0 0
    %364 = vmatpush.bf16.msra.mxu0 0
    %365 = vmatpush.bf16.msra.mxu0 0
    %366 = vmatpush.bf16.msra.mxu0 0
    %367 = vmatpush.bf16.msra.mxu0 %v358
    %368 = vmatmul.bf16.gmra.mxu0 %v354
    %v369 = vpop.f32.mrf.mxu0
    %v370 = vadd.f32 0.0, %v369
    %v371 = vpop.f32.mrf.mxu0
    %372 = vdwg.mxu0
    %v373 = vld [vmem:[#allocation2] sm:$0x1]
    %v375 = vperm.slane %v373, 0
    %v377 = vadd.f32 %v370, %v375
    %379 = vset.pattern.permute.xlu0 0
    %380 = vperm.xlu0 %379, %v377
    %v381 = vpop.permute.xlu0 %380
    %v383 = vadd.f32 %v316, %v381
    %v384 = vadd.f32 %v342, %v381
    %385 = vrot.lane.b32.xlu0 %v342, 1
    %v386 = vpop.permute.xlu0 %385
    %vm388 = vcmask 7168
    %v389 = vsel %vm388, %v386, 0.0
    %390 = vadd.xlane.f32.xlu0 %v389
    %v391 = vpop.xlane.xlu0 %390
    %v392 = vrot.slane %v391, 4
    %v393 = vadd.f32 %v391, %v392
    %v394 = vrot.slane %v393, 2
    %v395 = vadd.f32 %v393, %v394
    %v396 = vrot.slane %v395, 1
    %v397 = vadd.f32 %v395, %v396
    %s398 = vtos %v397
    %v399 = vstv %s398
    %v400 = vadd.f32 %v373, %v399
    %vm401 = vcmask 0
    %402 = vst.msk [vmem:[#allocation2] sm:$0x1] %vm401, %v400
    %v403 = vunpack.c.l.bf16 %v90
    %v404 = vunpack.c.h.bf16 %v90
    %v405 = vld [vmem:[#allocation10] sm:$0xff]
    %v406 = vld [vmem:[#allocation10 + $0x8] sm:$0xff]
    %s407 = smul.u32 0, 2048
    %s408 = scvt.s32.f32 %s407
    %v409 = vstv %s408
    %v410 = vadd.f32 %v405, %v409
    %v411 = vadd.f32 %v406, %v409
    %v412 = vstv %s93
    %v413 = vsub.f32 %v412, %v383
    %v414 = vsub.f32 %v412, %v384
    %v415 = vadd.f32 %v413, %v410
    %v416 = vadd.f32 %v414, %v411
    %v417 = vadd.f32 %v413, %v403
    %v418 = vadd.f32 %v414, %v404
    %v419 = vsub.f32 %v403, 1.0
    %v420 = vsub.f32 %v404, 1.0
    %v421 = vadd.f32 %v415, %v419
    %v422 = vadd.f32 %v416, %v420
    %v423 = vrcp.pop %v415
    %v424 = vrcp.pop %v416
    %v425 = vmul.f32 %v415, %v423
    %v426 = vmul.f32 %v416, %v424
    %v427 = vsub.f32 2.0, %v425
    %v428 = vsub.f32 2.0, %v426
    %v429 = vmul.f32 %v423, %v427
    %v430 = vmul.f32 %v424, %v428
    %vm431 = vcmp.gt.f32.partialorder %v421, 0.0
    %vm432 = vcmp.gt.f32.partialorder %v422, 0.0
    %v433 = vsel %vm431, %v421, 1.0
    %v434 = vsel %vm432, %v422, 1.0
    %v435 = vrcp.pop %v433
    %v436 = vrcp.pop %v434
    %v437 = vmul.f32 %v433, %v435
    %v438 = vmul.f32 %v434, %v436
    %v439 = vsub.f32 2.0, %v437
    %v440 = vsub.f32 2.0, %v438
    %v441 = vmul.f32 %v435, %v439
    %v442 = vmul.f32 %v436, %v440
    %v443 = vmul.f32 %v417, %v441
    %v444 = vmul.f32 %v418, %v442
    %v445 = vsel %vm431, %v443, 1.0
    %v446 = vsel %vm432, %v444, 1.0
    %v447 = vmul.f32 %v413, %v429
    %v448 = vmul.f32 %v414, %v430
    %v449 = vsub.f32 %v445, %v447
    %v450 = vsub.f32 %v446, %v448
    %v451 = vld [vmem:[#allocation12] sm:$0x1]
    %v452 = vmax.f32 %v91, 0.0
    %v453 = vmax.f32 %v92, 0.0
    %v454 = vmul.f32 %v452, %v449
    %v455 = vmul.f32 %v453, %v450
    %v456 = vadd.f32 %v454, %v455
    %457 = vadd.xlane.f32.xlu0 %v456
    %v458 = vpop.xlane.xlu0 %457
    %v459 = vrot.slane %v458, 4
    %v460 = vadd.f32 %v458, %v459
    %v461 = vrot.slane %v460, 2
    %v462 = vadd.f32 %v460, %v461
    %v463 = vrot.slane %v462, 1
    %v464 = vadd.f32 %v462, %v463
    %s465 = vtos %v464
    %v466 = vstv %s465
    %v467 = vadd.f32 %v451, %v466
    %468 = vst.msk [vmem:[#allocation12] sm:$0x1] %vm401, %v467
    // Predicated region
    $region46: #{tpu_custom_call.1} parent=1 // pred_check
      _
    $region47: #{tpu_custom_call.1} parent=1 // pred_check_branch
      %470 = sbr.rel (0) target = $region49
    $region48: #{tpu_custom_call.1} parent=1 // pred_region
      %472 = vsyncadd [#allocation6], 0
      %s474 = sshll.u32 [#allocation12], 4
      %s475 = int_to_ptr.vmem [resolvable:$true] %s474
      %s476 = sshll.u32 %s6, 4
      %s477 = int_to_ptr.hbm [resolvable:$true] %s476
      %479 = dma.vmem_to_hbm [thread:$0]  %s475, 16, %s477, [#allocation6]
    $region49: #{tpu_custom_call.1} parent=1 // pred_fallthru
      _
    // Predicated region
    $region50: #{tpu_custom_call.1} parent=1 // pred_check
      _
    $region51: #{tpu_custom_call.1} parent=1 // pred_check_branch
      %481 = sbr.rel (0) target = $region53
    $region52: #{tpu_custom_call.1} parent=1 // pred_region
      %483 = dma.done [#allocation6], 16
    $region53: #{tpu_custom_call.1} parent=1 // pred_fallthru
      _
    %484 = vsyncpa [#allocation5], 1
    %485 = vsyncpa [#allocation8], 1
    %486 = vsyncpa [#allocation11], 1
    %487 = vsyncpa [#allocation6], 1

</llo_original>
